<compile_context>
chip_gen: v6e
topology: v6e:2x2x1
jax: 0.10.0
libtpu: 0.0.40
codegen_flags: <defaults>
</compile_context>

<pallas_src>
import functools
import math

import jax
import jax.numpy as jnp
import numpy as np
from jax.experimental import pallas as pl
from jax.experimental.pallas import tpu as pltpu


def _round_up(x: int, m: int) -> int:
    return (x + m - 1) // m * m


def _int_pow(t, e: int):
    """t**e for a static positive integer e via exponentiation-by-squaring."""
    assert e >= 1
    result = None
    base = t
    while e:
        if e & 1:
            result = base if result is None else result * base
        e >>= 1
        if e:
            base = base * base
    return result


def _beta_pdf_sum_kernel(x_ref, o_ref, *, a: float, b: float,
                         inv_beta: float, log_norm: float, use_pow: bool):
    # x_ref: (TN, V) tile of the MAF annotation plane, native dtype.
    # o_ref: (1, 1, TN) f32 lane-dense row sums.
    x = x_ref[...].astype(jnp.float32)          # upcast in-register

    if use_pow:
        # Integer exponents: pure VALU multiplies, no EUP transcendentals.
        pdf = None
        ea, eb = int(a) - 1, int(b) - 1
        if ea > 0:
            pdf = _int_pow(x, ea)
        if eb > 0:
            q = _int_pow(jnp.float32(1.0) - x, eb)
            pdf = q if pdf is None else pdf * q
        if pdf is None:                          # a == b == 1: uniform pdf
            pdf = jnp.full(x.shape, jnp.float32(inv_beta))
        else:                                    # single multiply by 1/B(a,b)
            pdf = pdf * jnp.float32(inv_beta)
    else:
        # Fallback for non-integer / extreme parameters (log1p avoids the
        # cancellation of log(1 - x) near x ~ 0 flagged in review).
        logpdf = jnp.float32(-log_norm)
        if a != 1.0:
            logpdf = logpdf + jnp.float32(a - 1.0) * jnp.log(x)
        if b != 1.0:
            logpdf = logpdf + jnp.float32(b - 1.0) * jnp.log1p(-x)
        pdf = jnp.broadcast_to(jnp.exp(logpdf), x.shape)

    # scipy semantics: zero outside the [0, 1] support; NaN inputs propagate.
    pdf = jnp.where((x < 0.0) | (x > 1.0), jnp.float32(0.0), pdf)
    o_ref[...] = jnp.sum(pdf, axis=-1)[None, None, :].astype(o_ref.dtype)


def _dimension_semantics(num_tiles: int):
    # v7x has 2 TensorCores per chip; only CORE_PARALLEL actually shards a
    # grid axis across them ("parallel" vs "arbitrary" barely changes codegen).
    kind = (getattr(jax.devices()[0], "device_kind", "") or "").lower()
    if (num_tiles > 1 and ("v7" in kind or "7x" in kind)
            and hasattr(pltpu, "CORE_PARALLEL")):
        return (pltpu.CORE_PARALLEL,)
    return ("parallel",)


def geno_maf_beta(X, beta_a: int = 1, beta_b: int = 25, maf_dim: int = 0,
                  tile_rows: int = 1024):
    """X: (B, G, A, V) = (batch, genes, annotations, variants) -> (B, G)."""
    B, G, A, V = X.shape
    N = B * G

    # Lane-dense 2D view of only the MAF annotation plane, kept in the
    # input's NATIVE dtype.  allow_input_fusion=[True] below lets XLA fuse
    # this slice+reshape into the kernel's input DMA so the plane is not
    # materialized as an extra HBM round trip.
    x = X[:, :, maf_dim, :].reshape(N, V)
    itemsize = jnp.dtype(X.dtype).itemsize

    # Row tile: multiple of 8, large (amortizes ~0.35us per-grid-step
    # overhead), capped at ~4 MiB of f32 compute footprint so double-buffered
    # blocks + temporaries fit the default scoped VMEM on every generation
    # (v5e 16 MiB scoped, v6e 32 MiB, v7x 32 MiB scoped / 64 MiB physical).
    max_block_bytes = 4 * 1024 * 1024
    cap = max(8, (max_block_bytes // (V * 4)) // 8 * 8)
    TN = max(8, _round_up(min(int(tile_rows), cap, _round_up(N, 8)), 8))
    num_tiles = pl.cdiv(N, TN)

    # Compile-time normalizer: log B(a, b) and 1/B(a, b).
    a_f, b_f = float(beta_a), float(beta_b)
    log_norm = math.lgamma(a_f) + math.lgamma(b_f) - math.lgamma(a_f + b_f)
    inv_beta = math.exp(-log_norm)
    # Pow-by-squaring only when it is both exact and numerically safe in f32.
    use_pow = (a_f.is_integer() and b_f.is_integer()
               and a_f >= 1.0 and b_f >= 1.0
               and (a_f - 1.0) + (b_f - 1.0) <= 64.0
               and inv_beta < 1e30)

    cost = pl.CostEstimate(
        flops=int(N) * int(V) * 12,
        transcendentals=0 if use_pow else 2 * int(N) * int(V),
        bytes_accessed=int(N) * int(V) * itemsize + int(num_tiles) * TN * 4,
    )

    out = pl.pallas_call(
        functools.partial(_beta_pdf_sum_kernel, a=a_f, b=b_f,
                          inv_beta=float(inv_beta), log_norm=float(log_norm),
                          use_pow=use_pow),
        out_shape=jax.ShapeDtypeStruct((num_tiles, 1, TN), jnp.float32),
        grid_spec=pltpu.PrefetchScalarGridSpec(
            num_scalar_prefetch=0,
            grid=(num_tiles,),
            in_specs=[pl.BlockSpec((TN, V), lambda i: (i, 0))],
            out_specs=pl.BlockSpec((1, 1, TN), lambda i: (i, 0, 0)),
        ),
        compiler_params=pltpu.CompilerParams(
            dimension_semantics=_dimension_semantics(num_tiles),
            allow_input_fusion=[True],
        ),
        cost_estimate=cost,
    )(x)

    # Drop the garbage rows of the ragged last block (finite values on the
    # pow path, so no stray NaNs), restore (B, G).
    return out.reshape(num_tiles * TN)[:N].reshape(B, G)


def _reference_np(X_np, beta_a, beta_b, maf_dim):
    """float64 numpy reference for scipy.stats.beta.pdf(...).sum(axis=2)."""
    x = np.asarray(X_np, dtype=np.float64)[:, :, maf_dim, :]
    inv_beta = math.exp(math.lgamma(beta_a + beta_b)
                        - math.lgamma(beta_a) - math.lgamma(beta_b))
    pdf = inv_beta * np.power(x, beta_a - 1.0) * np.power(1.0 - x, beta_b - 1.0)
    pdf = np.where((x < 0.0) | (x > 1.0), 0.0, pdf)
    return pdf.sum(axis=2)


if __name__ == "__main__":
    key = jax.random.PRNGKey(0)
    k1, k2, k3 = jax.random.split(key, 3)

    # Test 1: default params (a=1, b=25, maf_dim=0); includes support
    # boundaries x=0 (pdf=b) and x=1 (pdf=0) in the MAF plane.
    B, G, A, V = 2, 8, 4, 16
    X = jax.random.uniform(k1, (B, G, A, V), dtype=jnp.float32)
    X = X.at[0, 0, 0, 0].set(0.0)
    X = X.at[0, 1, 0, 3].set(1.0)
    out = jax.block_until_ready(geno_maf_beta(X))
    ref = _reference_np(np.asarray(X), 1, 25, 0)
    assert out.shape == (B, G)
    np.testing.assert_allclose(np.asarray(out), ref, rtol=1e-4, atol=1e-4)

    # Test 2: non-default integer params, maf_dim=1, N=B*G not divisible by
    # the row tile (exercises the ragged last block / dropped OOB rows path).
    B2, G2, A2, V2 = 3, 5, 4, 16
    X2 = jax.random.uniform(k2, (B2, G2, A2, V2), dtype=jnp.float32)
    out2 = jax.block_until_ready(
        geno_maf_beta(X2, beta_a=2, beta_b=5, maf_dim=1, tile_rows=8))
    ref2 = _reference_np(np.asarray(X2), 2, 5, 1)
    assert out2.shape == (B2, G2)
    np.testing.assert_allclose(np.asarray(out2), ref2, rtol=1e-4, atol=1e-4)

    # Test 3: bf16 input streamed in its native dtype (half the DMA bytes),
    # upcast to f32 in-register inside the kernel.
    B3, G3, A3, V3 = 2, 8, 3, 32
    X3 = jax.random.uniform(k3, (B3, G3, A3, V3),
                            dtype=jnp.float32).astype(jnp.bfloat16)
    out3 = jax.block_until_ready(geno_maf_beta(X3))
    ref3 = _reference_np(np.asarray(X3.astype(jnp.float32)), 1, 25, 0)
    assert out3.shape == (B3, G3)
    np.testing.assert_allclose(np.asarray(out3), ref3, rtol=1e-4, atol=1e-4)

    print("KERNEL_OK")
</pallas_src>

<mosaic_0001>
module attributes {stable_mosaic.version = 11 : i64} {
  func.func @_beta_pdf_sum_kernel(%arg0: i32, %arg1: memref<16x16xf32, #tpu.memory_space<vmem>>, %arg2: memref<1x1x16xf32, #tpu.memory_space<vmem>>) attributes {dimension_semantics = [#tpu.dimension_semantics<parallel>], iteration_bounds = array<i64: 1>, scalar_prefetch = 0 : i64, scratch_operands = 0 : i64, tpu.core_type = #tpu.core_type<tc>, window_params = [{transform_indices = @transform_0, window_bounds = array<i64: 16, 16>}, {transform_indices = @transform_1, window_bounds = array<i64: 1, 1, 16>}]} {
    %c0 = arith.constant 0 : index
    %c0_0 = arith.constant 0 : index
    %0 = vector.load %arg1[%c0, %c0_0] : memref<16x16xf32, #tpu.memory_space<vmem>>, vector<16x16xf32>
    %cst = arith.constant 1.000000e+00 : f32
    %1 = vector.broadcast %cst : f32 to vector<16x16xf32>
    %2 = arith.subf %1, %0 : vector<16x16xf32>
    %3 = arith.mulf %2, %2 : vector<16x16xf32>
    %4 = arith.mulf %3, %3 : vector<16x16xf32>
    %5 = arith.mulf %4, %4 : vector<16x16xf32>
    %6 = arith.mulf %5, %5 : vector<16x16xf32>
    %7 = arith.mulf %5, %6 : vector<16x16xf32>
    %cst_1 = arith.constant 2.500000e+01 : f32
    %8 = vector.broadcast %cst_1 : f32 to vector<16x16xf32>
    %9 = arith.mulf %7, %8 : vector<16x16xf32>
    %cst_2 = arith.constant 0.000000e+00 : f32
    %10 = vector.broadcast %cst_2 : f32 to vector<16x16xf32>
    %11 = arith.cmpf olt, %0, %10 : vector<16x16xf32>
    %cst_3 = arith.constant 1.000000e+00 : f32
    %12 = vector.broadcast %cst_3 : f32 to vector<16x16xf32>
    %13 = arith.cmpf ogt, %0, %12 : vector<16x16xf32>
    %14 = arith.ori %11, %13 : vector<16x16xi1>
    %cst_4 = arith.constant 0.000000e+00 : f32
    %15 = vector.broadcast %cst_4 : f32 to vector<16x16xf32>
    %16 = arith.select %14, %15, %9 : vector<16x16xi1>, vector<16x16xf32>
    %cst_5 = arith.constant dense<0.000000e+00> : vector<16xf32>
    %17 = vector.multi_reduction <add>, %16, %cst_5 [1] : vector<16x16xf32> to vector<16xf32>
    %18 = vector.shape_cast %17 : vector<16xf32> to vector<1x1x16xf32>
    %c0_6 = arith.constant 0 : index
    %c0_7 = arith.constant 0 : index
    %c0_8 = arith.constant 0 : index
    %19 = vector.load %arg2[%c0_6, %c0_7, %c0_8] : memref<1x1x16xf32, #tpu.memory_space<vmem>>, vector<1x1x16xf32>
    tpu.vector_store %arg2[%c0_6, %c0_7, %c0_8], %18 {strides = array<i32>} : memref<1x1x16xf32, #tpu.memory_space<vmem>>, vector<1x1x16xf32>,
    return
  }
  func.func @transform_0(%arg0: i32) -> (i32, i32) {
    %c0_i32 = arith.constant 0 : i32
    %c0_i32_0 = arith.constant 0 : i32
    return %arg0, %c0_i32 : i32, i32
  }
  func.func @transform_1(%arg0: i32) -> (i32, i32, i32) {
    %c0_i32 = arith.constant 0 : i32
    %c0_i32_0 = arith.constant 0 : i32
    %c0_i32_1 = arith.constant 0 : i32
    return %arg0, %c0_i32, %c0_i32_0 : i32, i32, i32
  }
}

</mosaic_0001>

<llo_original>
// kernel: tpu_custom_call.1
$region0: #{tpu_custom_call.1}
  #allocation0 [shape = 'u32[]', space=smem, size = 0x4, offset = 0x4, fixed_abs, tag = 'smem constant byte address 0x4 - core index']
  #allocation1 [shape = 'u32[144,128]{1,0:T(1,128)}', space=vmem, size = 0x12000, scoped, tag = 'internal scratch']
  %s0 = inlined_call_operand.hbm [shape: f32[16,16], index: 0, kind: input, shape index: {}]
  %s1 = inlined_call_operand.hbm [shape: f32[1,1,16], index: 1, kind: output, shape index: {}]
  %s2 = sld [smem:[#allocation0]]
  $region18: #{tpu_custom_call.1} parent=0
    _
  %s4 = ssub.s32 1, %s2
  %s5 = scalar_select 0, %s4, %s2
  $region1: #{tpu_custom_call.1} parent=0
    #allocation2 [shape = 'u8[8192]{0}', space=vmem, size = 0x2000, scoped, tag = 'input window, operand 0, single buffered']
    #allocation3 [shape = 's32[1]{0}', space=sflag, size = 0x4, scoped, tag = 'scoped memory for tpu_custom_call.1']
    #allocation4 [shape = 's32[1]{0}', space=sflag, size = 0x4, scoped, tag = 'scoped memory for tpu_custom_call.1']
    #allocation5 [shape = 'u8[512]{0}', space=vmem, size = 0x400, scoped, tag = 'output window, operand 0, single buffered']
    %6 = vsyncpa [#allocation3], 0
    %7 = vsyncpa [#allocation4], 0
    // Predicated region
    $region2: #{tpu_custom_call.1} parent=1 // pred_check
      _
    $region3: #{tpu_custom_call.1} parent=1 // pred_check_branch
      %9 = sbr.rel (0) target = $region5
    $region4: #{tpu_custom_call.1} parent=1 // pred_region
      %s11 = ssub.s32 256, 256
      %12 = vsyncadd [#allocation3], %s11
      %s13 = sshll.u32 [#allocation2], 4
      %s14 = int_to_ptr.vmem [resolvable:$true] %s13
      %19 = dma.hbm_to_vmem [thread:$0]  %s0, 256, %s14, [#allocation3], 128, 128, 8
    $region5: #{tpu_custom_call.1} parent=1 // pred_fallthru
      _
    // Predicated region
    $region6: #{tpu_custom_call.1} parent=1 // pred_check
      _
    $region7: #{tpu_custom_call.1} parent=1 // pred_check_branch
      %21 = sbr.rel (0) target = $region9
    $region8: #{tpu_custom_call.1} parent=1 // pred_region
      %22 = dma.done [#allocation3], 256
    $region9: #{tpu_custom_call.1} parent=1 // pred_fallthru
      _
    %v23 = vld [vmem:[#allocation2] sm:$0xff]
    %v24 = vld [vmem:[#allocation2 + $0x8] sm:$0xff]
    %v25 = vsub.f32 1.0, %v23
    %v26 = vsub.f32 1.0, %v24
    %v27 = vmul.f32 %v25, %v25
    %v28 = vmul.f32 %v26, %v26
    %v29 = vmul.f32 %v27, %v27
    %v30 = vmul.f32 %v28, %v28
    %v31 = vmul.f32 %v29, %v29
    %v32 = vmul.f32 %v30, %v30
    %v33 = vmul.f32 %v31, %v31
    %v34 = vmul.f32 %v32, %v32
    %v35 = vmul.f32 %v31, %v33
    %v36 = vmul.f32 %v32, %v34
    %v37 = vmul.f32 %v35, 25.0
    %v38 = vmul.f32 %v36, 25.0
    %vm39 = vcmp.lt.f32.partialorder %v23, 0.0
    %vm40 = vcmp.lt.f32.partialorder %v24, 0.0
    %vm41 = vcmp.gt.f32.partialorder %v23, 1.0
    %vm42 = vcmp.gt.f32.partialorder %v24, 1.0
    %vm43 = vmor %vm39, %vm41
    %vm44 = vmor %vm40, %vm42
    %v45 = vsel %vm43, 0.0, %v37
    %v46 = vsel %vm44, 0.0, %v38
    %vm47 = vcmask 130048
    %v48 = vsel %vm47, %v45, 0.0
    %49 = vadd.xlane.f32.xlu0 %v48
    %v50 = vpop.xlane.xlu0 %49
    %v51 = vsel %vm47, %v46, 0.0
    %52 = vadd.xlane.f32.xlu0 %v51
    %v53 = vpop.xlane.xlu0 %52
    %v56 = vlaneseq
    %v57 = vand.u32 %v56, 127
    %v58 = vlaneseq
    %v59 = vshrl.u32 %v58, 7
    %v60 = vsub.s32 %v57, %v59
    %v61 = vrot.slane %v50, %v60
    %v62 = vadd.s32 %v57, 4294967288
    %v63 = vlaneseq
    %v64 = vshrl.u32 %v63, 7
    %v65 = vsub.s32 %v62, %v64
    %v66 = vrot.slane %v53, %v65
    %vm67 = vcmask 130112
    %v68 = vsel %vm67, %v66, %v61
    %vm70 = vcmask 122880
    %71 = vst.msk [vmem:[#allocation5] sm:$0x1] %vm70, %v68
    // Predicated region
    $region10: #{tpu_custom_call.1} parent=1 // pred_check
      _
    $region11: #{tpu_custom_call.1} parent=1 // pred_check_branch
      %73 = sbr.rel (0) target = $region13
    $region12: #{tpu_custom_call.1} parent=1 // pred_region
      %s75 = ssub.s32 16, 16
      %76 = vsyncadd [#allocation4], %s75
      %s78 = sshll.u32 [#allocation5], 4
      %s79 = int_to_ptr.vmem [resolvable:$true] %s78
      %81 = dma.vmem_to_hbm [thread:$0]  %s79, 16, %s1, [#allocation4]
    $region13: #{tpu_custom_call.1} parent=1 // pred_fallthru
      _
    // Predicated region
    $region14: #{tpu_custom_call.1} parent=1 // pred_check
      _
    $region15: #{tpu_custom_call.1} parent=1 // pred_check_branch
      %83 = sbr.rel (0) target = $region17
    $region16: #{tpu_custom_call.1} parent=1 // pred_region
      %84 = dma.done [#allocation4], 16
    $region17: #{tpu_custom_call.1} parent=1 // pred_fallthru
      _
    %85 = vsyncpa [#allocation3], 1
    %86 = vsyncpa [#allocation4], 1

</llo_original>
